<compile_context>
chip_gen: v7x
topology: tpu7x:2x2x1
jax: 0.10.0
libtpu: 0.0.40
codegen_flags: <defaults>
</compile_context>

<pallas_src>
import functools

import jax
import jax.numpy as jnp
import numpy as np
from jax.experimental import pallas as pl
from jax.experimental.pallas import tpu as pltpu

BN_EPS = 1e-5


def _attention_gate_kernel(g_ref, xr_ref, wg_ref, wx_ref, wf_ref, c_ref, out_ref,
                           *, f_l: int, f_int: int, block_diag: bool):
    f32 = jnp.float32
    xr = xr_ref[...]                       # (TM, 4*Fl), compute dtype
    x0 = xr[:, :f_l]                       # stride-2 samples (k = 0 sub-pixel)

    c = c_ref[...]                         # packed f32 constants (4, 4*Fint)
    bgx = c[0:1, :f_int]                   # folded BN bias of W_g + W_x
    wpsi = c[1:2, :f_int]                  # folded psi conv row
    bf4 = c[2:3, :]                        # folded final-conv bias, tiled x4
    bpsi = c[3:4, 0:1]                     # folded psi bias

    # Gating path: W_g(g) + W_x(x stride-2) with BatchNorm folded, ReLU.
    a = (jnp.dot(g_ref[...], wg_ref[...], preferred_element_type=f32)
         + jnp.dot(x0, wx_ref[...], preferred_element_type=f32)
         + bgx)
    a = jnp.maximum(a, 0.0)                # (TM, Fint), f32

    # psi: 1-output-channel conv as VPU mul + lane reduction + EUP sigmoid.
    psi = jax.nn.sigmoid(jnp.sum(a * wpsi, axis=-1, keepdims=True) + bpsi)

    # Final 1x1 conv on raw x; psi and the upsample weight are hoisted past the
    # matmul (wup[k] is pre-folded into wf per sub-pixel block).
    if block_diag:
        # One MXU push on a block-diagonal (4*Fl, 4*Fint) weight.
        o = jnp.dot(xr, wf_ref[...], preferred_element_type=f32)   # (TM, 4*Fint)
    else:
        # Four dense matmuls, concatenated so the store is one lane-dense write.
        o = jnp.concatenate(
            [jnp.dot(xr[:, k * f_l:(k + 1) * f_l], wf_ref[k],
                     preferred_element_type=f32) for k in range(4)],
            axis=-1)                                                # (TM, 4*Fint)

    out_ref[...] = jnp.maximum(o * psi + bf4, 0.0).astype(out_ref.dtype)


def _fold_bn(gamma, beta, mean, var):
    scale = gamma / jnp.sqrt(var + BN_EPS)
    return scale, beta - mean * scale


def attention_gate_pallas(x_nchw, g_nchw, params, *,
                          block_rows: int = 512,
                          compute_dtype=jnp.bfloat16,
                          out_dtype=None,
                          use_block_diag=None,
                          out_layout: str = "nchw"):
    if out_dtype is None:
        out_dtype = compute_dtype
    N, Fl, H, W = x_nchw.shape
    _, Fg, Hh, Wh = g_nchw.shape
    Fint = params['wg'].shape[1]
    M2 = N * Hh * Wh
    c4 = 4 * Fint
    if use_block_diag is None:
        # Block-diagonal single matmul only when K/N already pad to one MXU tile.
        use_block_diag = (4 * Fl <= 128 and c4 <= 128)

    # ---- layout plumbing: one fused reshape/transpose per tensor -------------
    # xr2d[m, k*Fl + c] = x[n, c, 2i+a, 2j+b],  m = (n, i, j), k = a*2 + b
    xr2d = (x_nchw.reshape(N, Fl, Hh, 2, Wh, 2)
                  .transpose(0, 2, 4, 3, 5, 1)          # (n, i, j, a, b, c)
                  .reshape(M2, 4 * Fl)
                  .astype(compute_dtype))
    g2d = (g_nchw.transpose(0, 2, 3, 1)
                 .reshape(M2, Fg)
                 .astype(compute_dtype))

    # ---- fold eval-mode BatchNorm + upsample weight into the convs -----------
    sg, bg = _fold_bn(*params['bn_g'])
    sx, bx = _fold_bn(*params['bn_x'])
    sp, bp = _fold_bn(*params['bn_psi'])
    sf, bf = _fold_bn(*params['bn_f'])

    wg_f = (params['wg'] * sg[None, :]).astype(compute_dtype)      # (Fg, Fint)
    wx_f = (params['wx'] * sx[None, :]).astype(compute_dtype)      # (Fl, Fint)
    wf_s = params['wf'] * sf[None, :]                              # (Fl, Fint) f32
    wup = params['wup'].reshape(4).astype(jnp.float32)             # k = a*2 + b

    if use_block_diag:
        wf_op = jnp.zeros((4 * Fl, c4), jnp.float32)
        for k in range(4):
            wf_op = wf_op.at[k * Fl:(k + 1) * Fl,
                             k * Fint:(k + 1) * Fint].set(wf_s * wup[k])
        wf_op = wf_op.astype(compute_dtype)                         # (4*Fl, 4*Fint)
    else:
        wf_op = (wf_s[None, :, :] * wup[:, None, None]).astype(compute_dtype)  # (4,Fl,Fint)

    # Packed f32 constants: [bgx ; wpsi_row ; bf tiled x4 ; bpsi].
    consts = jnp.zeros((4, c4), jnp.float32)
    consts = consts.at[0, :Fint].set(bg + bx)
    consts = consts.at[1, :Fint].set(params['wpsi'][:, 0] * sp)
    consts = consts.at[2, :].set(jnp.tile(bf, 4))
    consts = consts.at[3, 0].set(bp[0])

    # ---- row tile: sublane alignment, >=2 grid blocks, VMEM budget ------------
    in_b = jnp.dtype(compute_dtype).itemsize
    out_b = jnp.dtype(out_dtype).itemsize
    align = 16 if in_b < 4 else 8                                   # bf16 packs 16 rows
    tm = min(int(block_rows), M2)
    if M2 > align:                                                  # feed both v7x TCs
        tm = min(tm, -(-M2 // 2))
    per_row = 2 * ((Fg + 4 * Fl) * in_b + c4 * out_b)               # double-buffered streams
    vmem_budget = 24 << 20                                          # v7x scoped-default headroom
    while tm > align and tm * per_row > vmem_budget:
        tm //= 2
    tm = max(align, -(-tm // align) * align)
    n_blocks = -(-M2 // tm)
    m2p = n_blocks * tm
    if m2p != M2:
        pad = m2p - M2
        g2d = jnp.pad(g2d, ((0, pad), (0, 0)))
        xr2d = jnp.pad(xr2d, ((0, pad), (0, 0)))

    def row_spec(cols):
        return pl.BlockSpec((tm, cols), lambda i: (i, 0))

    def full_spec(arr):
        nd = arr.ndim
        return pl.BlockSpec(arr.shape, lambda i, _nd=nd: (0,) * _nd)

    final_k = 4 * Fl if use_block_diag else Fl
    flops = 2 * m2p * Fint * (Fg + Fl) + 2 * m2p * c4 * final_k + 6 * m2p * c4
    bytes_accessed = m2p * (Fg + 4 * Fl) * in_b + m2p * c4 * out_b

    out2d = pl.pallas_call(
        functools.partial(_attention_gate_kernel, f_l=Fl, f_int=Fint,
                          block_diag=use_block_diag),
        out_shape=jax.ShapeDtypeStruct((m2p, c4), out_dtype),
        grid=(n_blocks,),
        in_specs=[
            row_spec(Fg),                 # g2d
            row_spec(4 * Fl),             # xr2d
            full_spec(wg_f), full_spec(wx_f), full_spec(wf_op),
            full_spec(consts),
        ],
        out_specs=row_spec(c4),
        compiler_params=pltpu.CompilerParams(
            dimension_semantics=("parallel",)),
        cost_estimate=pl.CostEstimate(flops=int(flops),
                                      transcendentals=int(m2p),
                                      bytes_accessed=int(bytes_accessed)),
    )(g2d, xr2d, wg_f, wx_f, wf_op, consts)

    out2d = out2d[:M2]
    if out_layout == "rows":
        # Raw kernel layout (m=(n,i,j), block k=a*2+b, channel o) for fusion
        # into a downstream kernel — skips the un-rearrange HBM pass.
        return out2d
    # Undo the rearrangement: (M2, 4*Fint) -> NCHW (N, Fint, H, W)
    out = (out2d.reshape(N, Hh, Wh, 2, 2, Fint)
                 .transpose(0, 5, 1, 3, 2, 4)                      # (n, o, i, a, j, b)
                 .reshape(N, Fint, H, W))
    return out


def attention_gate_reference(x, g, params):
    """Pure-JAX NCHW reference matching the PyTorch forward (eval-mode BN)."""
    def conv1x1(t, w):                                             # w: (Cin, Cout)
        return jnp.einsum('nchw,co->nohw', t, w,
                          precision=jax.lax.Precision.HIGHEST)

    def bn(t, stats):
        gamma, beta, mean, var = stats
        s = gamma / jnp.sqrt(var + BN_EPS)
        return ((t - mean[None, :, None, None]) * s[None, :, None, None]
                + beta[None, :, None, None])

    phi = bn(conv1x1(g, params['wg']), params['bn_g'])
    xds = x[:, :, ::2, ::2]
    th = bn(conv1x1(xds, params['wx']), params['bn_x'])
    a = jax.nn.relu(phi + th)
    psi = jax.nn.sigmoid(bn(conv1x1(a, params['wpsi']), params['bn_psi']))
    N, _, Hh, Wh = psi.shape
    up = psi[:, :, :, None, :, None] * params['wup'][None, None, None, :, None, :]
    up = up.reshape(N, 1, Hh * 2, Wh * 2)                          # ConvTranspose(1,1,2,2)
    xg = x * up
    return jax.nn.relu(bn(conv1x1(xg, params['wf']), params['bn_f']))


if __name__ == "__main__":
    # Small but non-trivial config: 4*F_int = 128 -> lane-dense output tiles,
    # M2 = 2*16*16 = 512 rows.
    N, F_l, F_g, F_int = 2, 8, 16, 32
    H = W = 32
    Hh, Wh = H // 2, W // 2

    key = jax.random.PRNGKey(0)
    ks = jax.random.split(key, 12)

    def bn_stats(k, c):
        k1, k2, k3, k4 = jax.random.split(k, 4)
        gamma = 1.0 + 0.1 * jax.random.normal(k1, (c,), jnp.float32)
        beta = 0.1 * jax.random.normal(k2, (c,), jnp.float32)
        mean = 0.1 * jax.random.normal(k3, (c,), jnp.float32)
        var = 0.8 + 0.4 * jax.random.uniform(k4, (c,), jnp.float32)
        return (gamma, beta, mean, var)

    params = {
        'wg': 0.3 * jax.random.normal(ks[0], (F_g, F_int), jnp.float32),
        'wx': 0.3 * jax.random.normal(ks[1], (F_l, F_int), jnp.float32),
        'wpsi': 0.3 * jax.random.normal(ks[2], (F_int, 1), jnp.float32),
        'wup': 0.5 * jax.random.normal(ks[3], (2, 2), jnp.float32),
        'wf': 0.3 * jax.random.normal(ks[4], (F_l, F_int), jnp.float32),
        'bn_g': bn_stats(ks[5], F_int),
        'bn_x': bn_stats(ks[6], F_int),
        'bn_psi': bn_stats(ks[7], 1),
        'bn_f': bn_stats(ks[8], F_int),
    }

    x = jax.random.normal(ks[9], (N, F_l, H, W), jnp.float32)       # skip connection
    g = jax.random.normal(ks[10], (N, F_g, Hh, Wh), jnp.float32)    # gating signal

    ref = np.asarray(jax.block_until_ready(attention_gate_reference(x, g, params)))

    # f32 compute + f32 output, auto path (block-diagonal final matmul here):
    # tight check of the structure / BN folding / psi-hoisting math.
    out_f32 = attention_gate_pallas(x, g, params, block_rows=128,
                                    compute_dtype=jnp.float32)
    out_f32 = np.asarray(jax.block_until_ready(out_f32))
    np.testing.assert_allclose(out_f32, ref, rtol=2e-3, atol=2e-3)

    # f32, forcing the general 4-matmul + single lane-dense store path.
    out_gen = attention_gate_pallas(x, g, params, block_rows=128,
                                    compute_dtype=jnp.float32,
                                    use_block_diag=False)
    out_gen = np.asarray(jax.block_until_ready(out_gen))
    np.testing.assert_allclose(out_gen, ref, rtol=2e-3, atol=2e-3)

    # Default path: bf16 inputs AND bf16 output (halves HBM traffic), two row
    # blocks so a v7x megacore would use both TensorCores.  Looser tolerance
    # for the bf16 activation/weight/output quantization.
    out_bf16 = attention_gate_pallas(x, g, params)
    out_bf16 = np.asarray(jax.block_until_ready(out_bf16).astype(jnp.float32))
    np.testing.assert_allclose(out_bf16, ref, rtol=1e-1, atol=1e-1)

    print("KERNEL_OK")
</pallas_src>

<mosaic_0001>
module attributes {stable_mosaic.version = 11 : i64} {
  func.func @_attention_gate_kernel(%arg0: i32, %arg1: memref<128x16xf32, #tpu.memory_space<vmem>>, %arg2: memref<128x32xf32, #tpu.memory_space<vmem>>, %arg3: memref<16x32xf32, #tpu.memory_space<vmem>>, %arg4: memref<8x32xf32, #tpu.memory_space<vmem>>, %arg5: memref<32x128xf32, #tpu.memory_space<vmem>>, %arg6: memref<4x128xf32, #tpu.memory_space<vmem>>, %arg7: memref<128x128xf32, #tpu.memory_space<vmem>>) attributes {dimension_semantics = [#tpu.dimension_semantics<parallel>], iteration_bounds = array<i64: 4>, scalar_prefetch = 0 : i64, scratch_operands = 0 : i64, tpu.core_type = #tpu.core_type<tc>, window_params = [{transform_indices = @transform_0, window_bounds = array<i64: 128, 16>}, {transform_indices = @transform_1, window_bounds = array<i64: 128, 32>}, {pipeline_mode = #tpu.pipeline_mode<synchronous>, transform_indices = @transform_2, window_bounds = array<i64: 16, 32>}, {pipeline_mode = #tpu.pipeline_mode<synchronous>, transform_indices = @transform_3, window_bounds = array<i64: 8, 32>}, {pipeline_mode = #tpu.pipeline_mode<synchronous>, transform_indices = @transform_4, window_bounds = array<i64: 32, 128>}, {pipeline_mode = #tpu.pipeline_mode<synchronous>, transform_indices = @transform_5, window_bounds = array<i64: 4, 128>}, {transform_indices = @transform_6, window_bounds = array<i64: 128, 128>}]} {
    %c0 = arith.constant 0 : index
    %c0_0 = arith.constant 0 : index
    %0 = vector.load %arg2[%c0, %c0_0] : memref<128x32xf32, #tpu.memory_space<vmem>>, vector<128x32xf32>
    %1 = vector.extract_strided_slice %0 {offsets = [0, 0], sizes = [128, 8], strides = [1, 1]} : vector<128x32xf32> to vector<128x8xf32>
    %c0_1 = arith.constant 0 : index
    %c0_2 = arith.constant 0 : index
    %2 = vector.load %arg6[%c0_1, %c0_2] : memref<4x128xf32, #tpu.memory_space<vmem>>, vector<4x128xf32>
    %3 = vector.extract_strided_slice %2 {offsets = [0, 0], sizes = [1, 32], strides = [1, 1]} : vector<4x128xf32> to vector<1x32xf32>
    %4 = vector.extract_strided_slice %2 {offsets = [1, 0], sizes = [1, 32], strides = [1, 1]} : vector<4x128xf32> to vector<1x32xf32>
    %5 = vector.extract_strided_slice %2 {offsets = [2, 0], sizes = [1, 128], strides = [1, 1]} : vector<4x128xf32> to vector<1x128xf32>
    %6 = vector.extract_strided_slice %2 {offsets = [3, 0], sizes = [1, 1], strides = [1, 1]} : vector<4x128xf32> to vector<1x1xf32>
    %c0_3 = arith.constant 0 : index
    %c0_4 = arith.constant 0 : index
    %7 = vector.load %arg1[%c0_3, %c0_4] : memref<128x16xf32, #tpu.memory_space<vmem>>, vector<128x16xf32>
    %c0_5 = arith.constant 0 : index
    %c0_6 = arith.constant 0 : index
    %8 = vector.load %arg3[%c0_5, %c0_6] : memref<16x32xf32, #tpu.memory_space<vmem>>, vector<16x32xf32>
    %cst = arith.constant dense<0.000000e+00> : vector<128x32xf32>
    %9 = tpu.matmul %7, %8, %cst {dimension_numbers = #tpu.dot_dimension_numbers<[1], [0], [0], [1], [0, 0, 1, 1], [], []>} : vector<128x16xf32>, vector<16x32xf32>, vector<128x32xf32> -> vector<128x32xf32>
    %c0_7 = arith.constant 0 : index
    %c0_8 = arith.constant 0 : index
    %10 = vector.load %arg4[%c0_7, %c0_8] : memref<8x32xf32, #tpu.memory_space<vmem>>, vector<8x32xf32>
    %cst_9 = arith.constant dense<0.000000e+00> : vector<128x32xf32>
    %11 = tpu.matmul %1, %10, %cst_9 {dimension_numbers = #tpu.dot_dimension_numbers<[1], [0], [0], [1], [0, 0, 1, 1], [], []>} : vector<128x8xf32>, vector<8x32xf32>, vector<128x32xf32> -> vector<128x32xf32>
    %12 = arith.addf %9, %11 : vector<128x32xf32>
    %13 = vector.broadcast %3 : vector<1x32xf32> to vector<128x32xf32>
    %14 = arith.addf %12, %13 : vector<128x32xf32>
    %cst_10 = arith.constant 0.000000e+00 : f32
    %15 = vector.broadcast %cst_10 : f32 to vector<128x32xf32>
    %16 = arith.maximumf %14, %15 : vector<128x32xf32>
    %17 = vector.broadcast %4 : vector<1x32xf32> to vector<128x32xf32>
    %18 = arith.mulf %16, %17 : vector<128x32xf32>
    %cst_11 = arith.constant dense<0.000000e+00> : vector<128xf32>
    %19 = vector.multi_reduction <add>, %18, %cst_11 [1] : vector<128x32xf32> to vector<128xf32>
    %20 = vector.shape_cast %19 : vector<128xf32> to vector<128x1xf32>
    %21 = vector.broadcast %6 : vector<1x1xf32> to vector<128x1xf32>
    %22 = arith.addf %20, %21 : vector<128x1xf32>
    %23 = arith.negf %22 : vector<128x1xf32>
    %24 = math.exp %23 : vector<128x1xf32>
    %cst_12 = arith.constant 1.000000e+00 : f32
    %25 = vector.broadcast %cst_12 : f32 to vector<128x1xf32>
    %26 = arith.addf %25, %24 : vector<128x1xf32>
    %27 = arith.divf %25, %26 : vector<128x1xf32>
    %c0_13 = arith.constant 0 : index
    %c0_14 = arith.constant 0 : index
    %28 = vector.load %arg5[%c0_13, %c0_14] : memref<32x128xf32, #tpu.memory_space<vmem>>, vector<32x128xf32>
    %cst_15 = arith.constant dense<0.000000e+00> : vector<128x128xf32>
    %29 = tpu.matmul %0, %28, %cst_15 {dimension_numbers = #tpu.dot_dimension_numbers<[1], [0], [0], [1], [0, 0, 1, 1], [], []>} : vector<128x32xf32>, vector<32x128xf32>, vector<128x128xf32> -> vector<128x128xf32>
    %30 = vector.broadcast %27 : vector<128x1xf32> to vector<128x128xf32>
    %31 = arith.mulf %29, %30 : vector<128x128xf32>
    %32 = vector.broadcast %5 : vector<1x128xf32> to vector<128x128xf32>
    %33 = arith.addf %31, %32 : vector<128x128xf32>
    %cst_16 = arith.constant 0.000000e+00 : f32
    %34 = vector.broadcast %cst_16 : f32 to vector<128x128xf32>
    %35 = arith.maximumf %33, %34 : vector<128x128xf32>
    %c0_17 = arith.constant 0 : index
    %c0_18 = arith.constant 0 : index
    %36 = vector.load %arg7[%c0_17, %c0_18] : memref<128x128xf32, #tpu.memory_space<vmem>>, vector<128x128xf32>
    tpu.vector_store %arg7[%c0_17, %c0_18], %35 {strides = array<i32>} : memref<128x128xf32, #tpu.memory_space<vmem>>, vector<128x128xf32>,
    return
  }
  func.func @transform_0(%arg0: i32) -> (i32, i32) {
    %c0_i32 = arith.constant 0 : i32
    %c0_i32_0 = arith.constant 0 : i32
    return %arg0, %c0_i32 : i32, i32
  }
  func.func @transform_1(%arg0: i32) -> (i32, i32) {
    %c0_i32 = arith.constant 0 : i32
    %c0_i32_0 = arith.constant 0 : i32
    return %arg0, %c0_i32 : i32, i32
  }
  func.func @transform_2(%arg0: i32) -> (i32, i32) {
    %c0_i32 = arith.constant 0 : i32
    %c0_i32_0 = arith.constant 0 : i32
    %c0_i32_1 = arith.constant 0 : i32
    return %c0_i32, %c0_i32_0 : i32, i32
  }
  func.func @transform_3(%arg0: i32) -> (i32, i32) {
    %c0_i32 = arith.constant 0 : i32
    %c0_i32_0 = arith.constant 0 : i32
    %c0_i32_1 = arith.constant 0 : i32
    return %c0_i32, %c0_i32_0 : i32, i32
  }
  func.func @transform_4(%arg0: i32) -> (i32, i32) {
    %c0_i32 = arith.constant 0 : i32
    %c0_i32_0 = arith.constant 0 : i32
    %c0_i32_1 = arith.constant 0 : i32
    return %c0_i32, %c0_i32_0 : i32, i32
  }
  func.func @transform_5(%arg0: i32) -> (i32, i32) {
    %c0_i32 = arith.constant 0 : i32
    %c0_i32_0 = arith.constant 0 : i32
    %c0_i32_1 = arith.constant 0 : i32
    return %c0_i32, %c0_i32_0 : i32, i32
  }
  func.func @transform_6(%arg0: i32) -> (i32, i32) {
    %c0_i32 = arith.constant 0 : i32
    %c0_i32_0 = arith.constant 0 : i32
    return %arg0, %c0_i32 : i32, i32
  }
}

</mosaic_0001>

<llo_original>
// kernel: tpu_custom_call.1
$region0: #{tpu_custom_call.1}
  #allocation0 [shape = 'u32[]', space=smem, size = 0x4, offset = 0x4, fixed_abs, tag = 'smem constant byte address 0x4 - core index']
  #allocation1 [shape = 'u32[144,128]{1,0:T(1,128)}', space=vmem, size = 0x12000, scoped, tag = 'internal scratch']
  %s0 = inlined_call_operand.vmem [shape: f32[512,16], index: 0, kind: input, shape index: {}]
  %s1 = inlined_call_operand.vmem [shape: f32[512,32], index: 1, kind: input, shape index: {}]
  %s2 = inlined_call_operand.vmem [shape: f32[16,32], index: 2, kind: input, shape index: {}]
  %s3 = inlined_call_operand.vmem [shape: f32[8,32], index: 3, kind: input, shape index: {}]
  %s4 = inlined_call_operand.vmem [shape: f32[32,128], index: 4, kind: input, shape index: {}]
  %s5 = inlined_call_operand.vmem [shape: f32[4,128], index: 5, kind: input, shape index: {}]
  %s6 = inlined_call_operand.hbm [shape: f32[512,128], index: 6, kind: output, shape index: {}]
  %s7 = sld [smem:[#allocation0]]
  $region57: #{tpu_custom_call.1} parent=0
    _
  %s9 = ssub.s32 1, %s7
  %s10 = scalar_select 0, %s9, %s7
  $region1: #{tpu_custom_call.1} parent=0
    #allocation2 [shape = 'u8[131072]{0}', space=vmem, size = 0x20000, scoped, tag = 'output window, operand 0']
    #allocation3 [shape = 's32[2]{0}', space=sflag, size = 0x8, scoped, tag = 'scoped memory for tpu_custom_call.1']
    %11 = vsyncpa [#allocation3], 0
    %s12 = scalar_lea.sflag [#allocation3], 1
    %13 = vsyncpa %s12, 0
    loop: start=0, step=1, limit=6
    $region2: #{tpu_custom_call.1} parent=1 // loop_pre_header
      _
    $region3: #{tpu_custom_call.1} parent=1 // loop_header
      %s15 = sphi 0, %s19
      %p16 = scmp.ge.s32.totalorder %s15, 6
      %s25 = sphi 0, %s27
      %s28 = sphi 0, %s25
      %s29 = sphi 0, %s28
      %s45 = sphi 0, %s29
      %s51 = sphi 0, %s53
      %s54 = sphi 0, %s51
      %s55 = sphi 0, %s54
      %s71 = sphi 0, %s55
      %s75 = sphi 0, %s75
      %s77 = sphi 0, %s75
      %s78 = sphi 0, %s77
      %s92 = sphi 0, %s78
      %s96 = sphi 0, %s96
      %s98 = sphi 0, %s96
      %s99 = sphi 0, %s98
      %s113 = sphi 0, %s99
      %s117 = sphi 0, %s117
      %s119 = sphi 0, %s117
      %s120 = sphi 0, %s119
      %s134 = sphi 0, %s120
      %s138 = sphi 0, %s138
      %s140 = sphi 0, %s138
      %s141 = sphi 0, %s140
      %s155 = sphi 0, %s141
      %s161 = sphi 0, %s163
      %s164 = sphi 0, %s161
      %s165 = sphi 0, %s164
      %s181 = sphi 0, %s165
    $region4: #{tpu_custom_call.1} parent=1 // loop_header_branch
      %18 = sbr.rel (%p16) target = $region8
    $region5: #{tpu_custom_call.1} parent=1 // loop_body
      %s20 = ssub.s32 %s15, 1
      %s21 = ssub.s32 %s15, 2
      %s22 = sadd.s32 %s15, 1
      %s23 = ssub.s32 %s15, %s22
      %p24 = scmp.eq.s32.totalorder %s23, 0
      %s26 = sadd.s32 %s25, 1
      %s27 = scalar_select %p24, %s25, %s26
      %p30 = pneg %p24
      %p31 = scmp.eq.s32.totalorder %s15, 3
      %p32 = por %p30, %p31
      %p33 = scmp.ne.s32.totalorder %s25, %s28
      %p34 = scmp.eq.s32.totalorder %s15, 0
      %p35 = por %p33, %p34
      %p36 = scmp.ne.s32.totalorder %s25, %s28
      %p37 = scmp.eq.s32.totalorder %s20, 3
      %p38 = por %p36, %p37
      %p39 = scmp.ne.s32.totalorder %s28, %s29
      %p40 = scmp.eq.s32.totalorder %s20, 0
      %p41 = por %p39, %p40
      %p42 = scmp.ne.s32.totalorder %s28, %s29
      %p43 = scmp.eq.s32.totalorder %s21, 3
      %p44 = por %p42, %p43
      %p46 = scmp.ne.s32.totalorder %s29, %s45
      %p47 = scmp.eq.s32.totalorder %s21, 0
      %p48 = por %p46, %p47
      %s49 = ssub.s32 %s15, %s22
      %p50 = scmp.eq.s32.totalorder %s49, 0
      %s52 = sadd.s32 %s51, 1
      %s53 = scalar_select %p50, %s51, %s52
      %p56 = pneg %p50
      %p57 = scmp.eq.s32.totalorder %s15, 3
      %p58 = por %p56, %p57
      %p59 = scmp.ne.s32.totalorder %s51, %s54
      %p60 = scmp.eq.s32.totalorder %s15, 0
      %p61 = por %p59, %p60
      %p62 = scmp.ne.s32.totalorder %s51, %s54
      %p63 = scmp.eq.s32.totalorder %s20, 3
      %p64 = por %p62, %p63
      %p65 = scmp.ne.s32.totalorder %s54, %s55
      %p66 = scmp.eq.s32.totalorder %s20, 0
      %p67 = por %p65, %p66
      %p68 = scmp.ne.s32.totalorder %s54, %s55
      %p69 = scmp.eq.s32.totalorder %s21, 3
      %p70 = por %p68, %p69
      %p72 = scmp.ne.s32.totalorder %s55, %s71
      %p73 = scmp.eq.s32.totalorder %s21, 0
      %p74 = por %p72, %p73
      %s76 = sadd.s32 %s75, 1
      %p79 = scmp.eq.s32.totalorder %s15, 3
      %p80 = scmp.ne.s32.totalorder %s75, %s77
      %p81 = scmp.eq.s32.totalorder %s15, 0
      %p82 = por %p80, %p81
      %p83 = scmp.ne.s32.totalorder %s75, %s77
      %p84 = scmp.eq.s32.totalorder %s20, 3
      %p85 = por %p83, %p84
      %p86 = scmp.ne.s32.totalorder %s77, %s78
      %p87 = scmp.eq.s32.totalorder %s20, 0
      %p88 = por %p86, %p87
      %p89 = scmp.ne.s32.totalorder %s77, %s78
      %p90 = scmp.eq.s32.totalorder %s21, 3
      %p91 = por %p89, %p90
      %p93 = scmp.ne.s32.totalorder %s78, %s92
      %p94 = scmp.eq.s32.totalorder %s21, 0
      %p95 = por %p93, %p94
      %s97 = sadd.s32 %s96, 1
      %p100 = scmp.eq.s32.totalorder %s15, 3
      %p101 = scmp.ne.s32.totalorder %s96, %s98
      %p102 = scmp.eq.s32.totalorder %s15, 0
      %p103 = por %p101, %p102
      %p104 = scmp.ne.s32.totalorder %s96, %s98
      %p105 = scmp.eq.s32.totalorder %s20, 3
      %p106 = por %p104, %p105
      %p107 = scmp.ne.s32.totalorder %s98, %s99
      %p108 = scmp.eq.s32.totalorder %s20, 0
      %p109 = por %p107, %p108
      %p110 = scmp.ne.s32.totalorder %s98, %s99
      %p111 = scmp.eq.s32.totalorder %s21, 3
      %p112 = por %p110, %p111
      %p114 = scmp.ne.s32.totalorder %s99, %s113
      %p115 = scmp.eq.s32.totalorder %s21, 0
      %p116 = por %p114, %p115
      %s118 = sadd.s32 %s117, 1
      %p121 = scmp.eq.s32.totalorder %s15, 3
      %p122 = scmp.ne.s32.totalorder %s117, %s119
      %p123 = scmp.eq.s32.totalorder %s15, 0
      %p124 = por %p122, %p123
      %p125 = scmp.ne.s32.totalorder %s117, %s119
      %p126 = scmp.eq.s32.totalorder %s20, 3
      %p127 = por %p125, %p126
      %p128 = scmp.ne.s32.totalorder %s119, %s120
      %p129 = scmp.eq.s32.totalorder %s20, 0
      %p130 = por %p128, %p129
      %p131 = scmp.ne.s32.totalorder %s119, %s120
      %p132 = scmp.eq.s32.totalorder %s21, 3
      %p133 = por %p131, %p132
      %p135 = scmp.ne.s32.totalorder %s120, %s134
      %p136 = scmp.eq.s32.totalorder %s21, 0
      %p137 = por %p135, %p136
      %s139 = sadd.s32 %s138, 1
      %p142 = scmp.eq.s32.totalorder %s15, 3
      %p143 = scmp.ne.s32.totalorder %s138, %s140
      %p144 = scmp.eq.s32.totalorder %s15, 0
      %p145 = por %p143, %p144
      %p146 = scmp.ne.s32.totalorder %s138, %s140
      %p147 = scmp.eq.s32.totalorder %s20, 3
      %p148 = por %p146, %p147
      %p149 = scmp.ne.s32.totalorder %s140, %s141
      %p150 = scmp.eq.s32.totalorder %s20, 0
      %p151 = por %p149, %p150
      %p152 = scmp.ne.s32.totalorder %s140, %s141
      %p153 = scmp.eq.s32.totalorder %s21, 3
      %p154 = por %p152, %p153
      %p156 = scmp.ne.s32.totalorder %s141, %s155
      %p157 = scmp.eq.s32.totalorder %s21, 0
      %p158 = por %p156, %p157
      %s159 = ssub.s32 %s15, %s22
      %p160 = scmp.eq.s32.totalorder %s159, 0
      %s162 = sadd.s32 %s161, 1
      %s163 = scalar_select %p160, %s161, %s162
      %p166 = pneg %p160
      %p167 = scmp.eq.s32.totalorder %s15, 3
      %p168 = por %p166, %p167
      %p169 = scmp.ne.s32.totalorder %s161, %s164
      %p170 = scmp.eq.s32.totalorder %s15, 0
      %p171 = por %p169, %p170
      %p172 = scmp.ne.s32.totalorder %s161, %s164
      %p173 = scmp.eq.s32.totalorder %s20, 3
      %p174 = por %p172, %p173
      %p175 = scmp.ne.s32.totalorder %s164, %s165
      %p176 = scmp.eq.s32.totalorder %s20, 0
      %p177 = por %p175, %p176
      %p178 = scmp.ne.s32.totalorder %s164, %s165
      %p179 = scmp.eq.s32.totalorder %s21, 3
      %p180 = por %p178, %p179
      %p182 = scmp.ne.s32.totalorder %s165, %s181
      %p183 = scmp.eq.s32.totalorder %s21, 0
      %p184 = por %p182, %p183
      %p185 = scmp.le.s32.totalorder 1, %s15
      %p186 = scmp.lt.s32.totalorder %s15, 5
      %p187 = pnand %p185, %p186
      %p188 = pneg %p187
      // Predicated region
      $region9: #{tpu_custom_call.1} parent=5 // pred_check
        _
      $region10: #{tpu_custom_call.1} parent=5 // pred_check_branch
        %190 = sbr.rel (%p187) target = $region12
      $region11: #{tpu_custom_call.1} parent=5 // pred_region
        %s191 = ssub.s32 %s15, 1
        // Predicated region
        $region13: #{tpu_custom_call.1} parent=11 // pred_check
          %p192 = pneg %p88
        $region14: #{tpu_custom_call.1} parent=11 // pred_check_branch
          %194 = sbr.rel (%p192) target = $region16
        $region15: #{tpu_custom_call.1} parent=11 // pred_region
          _
        $region16: #{tpu_custom_call.1} parent=11 // pred_fallthru
          _
        // Predicated region
        $region17: #{tpu_custom_call.1} parent=11 // pred_check
          %p195 = pneg %p109
        $region18: #{tpu_custom_call.1} parent=11 // pred_check_branch
          %197 = sbr.rel (%p195) target = $region20
        $region19: #{tpu_custom_call.1} parent=11 // pred_region
          _
        $region20: #{tpu_custom_call.1} parent=11 // pred_fallthru
          _
        // Predicated region
        $region21: #{tpu_custom_call.1} parent=11 // pred_check
          %p198 = pneg %p130
        $region22: #{tpu_custom_call.1} parent=11 // pred_check_branch
          %200 = sbr.rel (%p198) target = $region24
        $region23: #{tpu_custom_call.1} parent=11 // pred_region
          _
        $region24: #{tpu_custom_call.1} parent=11 // pred_fallthru
          _
        // Predicated region
        $region25: #{tpu_custom_call.1} parent=11 // pred_check
          %p201 = pneg %p151
        $region26: #{tpu_custom_call.1} parent=11 // pred_check_branch
          %203 = sbr.rel (%p201) target = $region28
        $region27: #{tpu_custom_call.1} parent=11 // pred_region
          _
        $region28: #{tpu_custom_call.1} parent=11 // pred_fallthru
          _
      $region12: #{tpu_custom_call.1} parent=5 // pred_fallthru
        _
      %p204 = scmp.lt.s32.totalorder %s15, 4
      // Predicated region
      $region29: #{tpu_custom_call.1} parent=5 // pred_check
        %p205 = pneg %p204
      $region30: #{tpu_custom_call.1} parent=5 // pred_check_branch
        %207 = sbr.rel (%p205) target = $region32
      $region31: #{tpu_custom_call.1} parent=5 // pred_region
        // Predicated region
        $region33: #{tpu_custom_call.1} parent=31 // pred_check
          %p208 = pneg %p35
        $region34: #{tpu_custom_call.1} parent=31 // pred_check_branch
          %210 = sbr.rel (%p208) target = $region36
        $region35: #{tpu_custom_call.1} parent=31 // pred_region
          %s211 = smul.u32 16, %s15
          %p212 = scmp.lt.s32.totalorder %s211, 63
          %s213 = scalar_select %p212, %s211, 63
          %s214 = smul.addr %s213, 8
          %s215 = scalar_lea.vmem %s0, %s214
          %s216 = smul.u32 16, %s15
        $region36: #{tpu_custom_call.1} parent=31 // pred_fallthru
          _
        // Predicated region
        $region37: #{tpu_custom_call.1} parent=31 // pred_check
          %p217 = pneg %p61
        $region38: #{tpu_custom_call.1} parent=31 // pred_check_branch
          %219 = sbr.rel (%p217) target = $region40
        $region39: #{tpu_custom_call.1} parent=31 // pred_region
          %s220 = smul.u32 16, %s15
          %p221 = scmp.lt.s32.totalorder %s220, 63
          %s222 = scalar_select %p221, %s220, 63
          %s223 = smul.addr %s222, 8
          %s224 = scalar_lea.vmem %s1, %s223
          %s225 = smul.u32 16, %s15
        $region40: #{tpu_custom_call.1} parent=31 // pred_fallthru
          _
      $region32: #{tpu_custom_call.1} parent=5 // pred_fallthru
        _
      %p226 = scmp.le.s32.totalorder 1, %s15
      %p227 = scmp.lt.s32.totalorder %s15, 5
      %p228 = pnand %p226, %p227
      %p229 = pneg %p228
      // Predicated region
      $region41: #{tpu_custom_call.1} parent=5 // pred_check
        _
      $region42: #{tpu_custom_call.1} parent=5 // pred_check_branch
        %231 = sbr.rel (%p228) target = $region44
      $region43: #{tpu_custom_call.1} parent=5 // pred_region
        %s232 = ssub.s32 %s15, 1
        %s233 = smul.u32 16, %s20
        %p234 = scmp.lt.s32.totalorder %s233, 63
        %s235 = scalar_select %p234, %s233, 63
        %s236 = smul.addr %s235, 8
        %s237 = scalar_lea.vmem %s0, %s236
        %p238 = pneg %p41
        %p239 = pneg %p38
        %s240 = smul.u32 16, %s20
        %p241 = scmp.lt.s32.totalorder %s240, 63
        %s242 = scalar_select %p241, %s240, 63
        %s243 = smul.addr %s242, 8
        %s244 = scalar_lea.vmem %s1, %s243
        %p245 = pneg %p67
        %p246 = pneg %p64
        %p247 = pneg %p88
        %p248 = pneg %p85
        %p249 = pneg %p109
        %p250 = pneg %p106
        %p251 = pneg %p130
        %p252 = pneg %p127
        %p253 = pneg %p151
        %p254 = pneg %p148
        %p255 = pneg %p177
        %p256 = pneg %p174
        %s257 = sand.u32 %s164, 1
        %s258 = scalar_lea.sflag [#allocation3], %s257
        %s259 = sand.u32 %s164, 1
        %s260 = smul.addr %s259, 128
        %s261 = scalar_lea.vmem [#allocation2], %s260
        %s262 = smul.u32 16, %s20
        %p263 = scmp.lt.s32.totalorder %s262, 63
        %s264 = scalar_select %p263, %s262, 63
        %s265 = smul.addr %s264, 8
        %s266 = scalar_lea.vmem %s0, %s265
        %s267 = smul.u32 16, %s20
        %s268 = smul.u32 16, %s20
        %p269 = scmp.lt.s32.totalorder %s268, 63
        %s270 = scalar_select %p269, %s268, 63
        %s271 = smul.addr %s270, 8
        %s272 = scalar_lea.vmem %s1, %s271
        %s273 = smul.u32 16, %s20
        %s274 = smul.u32 16, %s20
        %v275 = vld [vmem:[%s272] sm:$0xff]
        %v276 = vld [vmem:[%s272 + $0x8] sm:$0xff]
        %v277 = vld [vmem:[%s272 + $0x10] sm:$0xff]
        %v278 = vld [vmem:[%s272 + $0x18] sm:$0xff]
        %v279 = vld [vmem:[%s272 + $0x20] sm:$0xff]
        %v280 = vld [vmem:[%s272 + $0x28] sm:$0xff]
        %v281 = vld [vmem:[%s272 + $0x30] sm:$0xff]
        %v282 = vld [vmem:[%s272 + $0x38] sm:$0xff]
        %v283 = vld [vmem:[%s272 + $0x40] sm:$0xff]
        %v284 = vld [vmem:[%s272 + $0x48] sm:$0xff]
        %v285 = vld [vmem:[%s272 + $0x50] sm:$0xff]
        %v286 = vld [vmem:[%s272 + $0x58] sm:$0xff]
        %v287 = vld [vmem:[%s272 + $0x60] sm:$0xff]
        %v288 = vld [vmem:[%s272 + $0x68] sm:$0xff]
        %v289 = vld [vmem:[%s272 + $0x70] sm:$0xff]
        %v290 = vld [vmem:[%s272 + $0x78] sm:$0xff]
        %v291 = vld [vmem:[%s5] sm:$0xf]
        %v292 = vld [vmem:[%s266] sm:$0xff]
        %v293 = vld [vmem:[%s266 + $0x8] sm:$0xff]
        %v294 = vld [vmem:[%s266 + $0x10] sm:$0xff]
        %v295 = vld [vmem:[%s266 + $0x18] sm:$0xff]
        %v296 = vld [vmem:[%s266 + $0x20] sm:$0xff]
        %v297 = vld [vmem:[%s266 + $0x28] sm:$0xff]
        %v298 = vld [vmem:[%s266 + $0x30] sm:$0xff]
        %v299 = vld [vmem:[%s266 + $0x38] sm:$0xff]
        %v300 = vld [vmem:[%s266 + $0x40] sm:$0xff]
        %v301 = vld [vmem:[%s266 + $0x48] sm:$0xff]
        %v302 = vld [vmem:[%s266 + $0x50] sm:$0xff]
        %v303 = vld [vmem:[%s266 + $0x58] sm:$0xff]
        %v304 = vld [vmem:[%s266 + $0x60] sm:$0xff]
        %v305 = vld [vmem:[%s266 + $0x68] sm:$0xff]
        %v306 = vld [vmem:[%s266 + $0x70] sm:$0xff]
        %v307 = vld [vmem:[%s266 + $0x78] sm:$0xff]
        %v308 = vld [vmem:[%s2] sm:$0xff]
        %v309 = vld [vmem:[%s2 + $0x8] sm:$0xff]
        %v310 = vld [vmem:[%s3] sm:$0xff]
        %vm311 = vcmask 64512
        %v313 = vsel %vm311, %v275, 0
        %v316 = vsel %vm311, %v276, 0
        %v319 = vsel %vm311, %v277, 0
        %v322 = vsel %vm311, %v278, 0
        %v325 = vsel %vm311, %v279, 0
        %v328 = vsel %vm311, %v280, 0
        %v331 = vsel %vm311, %v281, 0
        %v334 = vsel %vm311, %v282, 0
        %v337 = vsel %vm311, %v283, 0
        %v340 = vsel %vm311, %v284, 0
        %v343 = vsel %vm311, %v285, 0
        %v346 = vsel %vm311, %v286, 0
        %v349 = vsel %vm311, %v287, 0
        %v352 = vsel %vm311, %v288, 0
        %v355 = vsel %vm311, %v289, 0
        %v358 = vsel %vm311, %v290, 0
        %360 = vmatprep.subr.mxu0 0.0
        %361 = vmatpush1.msra.mxu0 %v310
        %362 = vmatprep.subr.mxu0 0.0
        %363 = vmatpush1.msra.mxu0 0.0
        %364 = vmatprep.subr.mxu0 0.0
        %365 = vmatpush1.msra.mxu0 0.0
        %366 = vmatprep.subr.mxu0 0.0
        %367 = vmatpush1.msra.mxu0 0.0
        %368 = vmatprep.subr.mxu0 0.0
        %369 = vmatpush1.msra.mxu0 0.0
        %370 = vmatprep.subr.mxu0 0.0
        %371 = vmatpush1.msra.mxu0 0.0
        %372 = vmatprep.subr.mxu0 0.0
        %373 = vmatpush1.msra.mxu0 0.0
        %374 = vmatprep.subr.mxu0 0.0
        %375 = vmatpush1.msra.mxu0 0.0
        %376 = vmatprep.subr.mxu0 0.0
        %377 = vmatpush1.msra.mxu0 0.0
        %378 = vmatprep.subr.mxu0 0.0
        %379 = vmatpush1.msra.mxu0 0.0
        %380 = vmatprep.subr.mxu0 0.0
        %381 = vmatpush1.msra.mxu0 0.0
        %382 = vmatprep.subr.mxu0 0.0
        %383 = vmatpush1.msra.mxu0 0.0
        %384 = vmatprep.subr.mxu0 0.0
        %385 = vmatpush1.msra.mxu0 0.0
        %386 = vmatprep.subr.mxu0 0.0
        %387 = vmatpush1.msra.mxu0 0.0
        %388 = vmatprep.subr.mxu0 0.0
        %389 = vmatpush1.msra.mxu0 0.0
        %390 = vmatprep.subr.mxu0 0.0
        %391 = vmatpush1.msra.mxu0 0.0
        %392 = vmatprep.subr.mxu0 0.0
        %393 = vmatpush1.msra.mxu0 0.0
        %394 = vmatprep.subr.mxu0 0.0
        %395 = vmatpush1.msra.mxu0 0.0
        %396 = vmatprep.subr.mxu0 0.0
        %397 = vmatpush1.msra.mxu0 0.0
        %398 = vmatprep.subr.mxu0 0.0
        %399 = vmatpush1.msra.mxu0 0.0
        %400 = vmatprep.subr.mxu0 0.0
        %401 = vmatpush1.msra.mxu0 0.0
        %402 = vmatprep.subr.mxu0 0.0
        %403 = vmatpush1.msra.mxu0 0.0
        %404 = vmatprep.subr.mxu0 0.0
        %405 = vmatpush1.msra.mxu0 0.0
        %406 = vmatprep.subr.mxu0 0.0
        %407 = vmatpush1.msra.mxu0 0.0
        %408 = vmatprep.subr.mxu0 0.0
        %409 = vmatpush1.msra.mxu0 0.0
        %410 = vmatprep.subr.mxu0 0.0
        %411 = vmatpush1.msra.mxu0 0.0
        %412 = vmatprep.subr.mxu0 0.0
        %413 = vmatpush1.msra.mxu0 0.0
        %414 = vmatprep.subr.mxu0 0.0
        %415 = vmatpush1.msra.mxu0 0.0
        %416 = vmatprep.subr.mxu0 0.0
        %417 = vmatpush1.msra.mxu0 0.0
        %418 = vmatprep.subr.mxu0 0.0
        %419 = vmatpush1.msra.mxu0 0.0
        %420 = vmatprep.subr.mxu0 0.0
        %421 = vmatpush1.msra.mxu0 0.0
        %422 = vmatprep.subr.mxu0 0.0
        %423 = vmatpush1.msra.mxu0 0.0
        %424 = vmatprep.mubr.f32.mxu0 0.0
        %425 = vmatmul.mubr.f32.gmra.mrb[0].mxu0 %v313
        %v426 = vpop.f32.mrb[0].mxu0
        %v427 = vadd.f32 0.0, %v426
        %v428 = vpop.f32.mrb[0].mxu0
        %429 = vmatprep.mubr.f32.mxu0 0.0
        %430 = vmatmul.mubr.f32.gmra.mrb[0].mxu0 %v316
        %v431 = vpop.f32.mrb[0].mxu0
        %v432 = vadd.f32 0.0, %v431
        %v433 = vpop.f32.mrb[0].mxu0
        %434 = vmatprep.mubr.f32.mxu0 0.0
        %435 = vmatmul.mubr.f32.gmra.mrb[0].mxu0 %v319
        %v436 = vpop.f32.mrb[0].mxu0
        %v437 = vadd.f32 0.0, %v436
        %v438 = vpop.f32.mrb[0].mxu0
        %439 = vmatprep.mubr.f32.mxu0 0.0
        %440 = vmatmul.mubr.f32.gmra.mrb[0].mxu0 %v322
        %v441 = vpop.f32.mrb[0].mxu0
        %v442 = vadd.f32 0.0, %v441
        %v443 = vpop.f32.mrb[0].mxu0
        %444 = vmatprep.mubr.f32.mxu0 0.0
        %445 = vmatmul.mubr.f32.gmra.mrb[0].mxu0 %v325
        %v446 = vpop.f32.mrb[0].mxu0
        %v447 = vadd.f32 0.0, %v446
        %v448 = vpop.f32.mrb[0].mxu0
        %449 = vmatprep.mubr.f32.mxu0 0.0
        %450 = vmatmul.mubr.f32.gmra.mrb[0].mxu0 %v328
        %v451 = vpop.f32.mrb[0].mxu0
        %v452 = vadd.f32 0.0, %v451
        %v453 = vpop.f32.mrb[0].mxu0
        %454 = vmatprep.mubr.f32.mxu0 0.0
        %455 = vmatmul.mubr.f32.gmra.mrb[0].mxu0 %v331
        %v456 = vpop.f32.mrb[0].mxu0
        %v457 = vadd.f32 0.0, %v456
        %v458 = vpop.f32.mrb[0].mxu0
        %459 = vmatprep.mubr.f32.mxu0 0.0
        %460 = vmatmul.mubr.f32.gmra.mrb[0].mxu0 %v334
        %v461 = vpop.f32.mrb[0].mxu0
        %v462 = vadd.f32 0.0, %v461
        %v463 = vpop.f32.mrb[0].mxu0
        %464 = vmatprep.mubr.f32.mxu0 0.0
        %465 = vmatmul.mubr.f32.gmra.mrb[0].mxu0 %v337
        %v466 = vpop.f32.mrb[0].mxu0
        %v467 = vadd.f32 0.0, %v466
        %v468 = vpop.f32.mrb[0].mxu0
        %469 = vmatprep.mubr.f32.mxu0 0.0
        %470 = vmatmul.mubr.f32.gmra.mrb[0].mxu0 %v340
        %v471 = vpop.f32.mrb[0].mxu0
        %v472 = vadd.f32 0.0, %v471
        %v473 = vpop.f32.mrb[0].mxu0
        %474 = vmatprep.mubr.f32.mxu0 0.0
        %475 = vmatmul.mubr.f32.gmra.mrb[0].mxu0 %v343
        %v476 = vpop.f32.mrb[0].mxu0
        %v477 = vadd.f32 0.0, %v476
        %v478 = vpop.f32.mrb[0].mxu0
        %479 = vmatprep.mubr.f32.mxu0 0.0
        %480 = vmatmul.mubr.f32.gmra.mrb[0].mxu0 %v346
        %v481 = vpop.f32.mrb[0].mxu0
        %v482 = vadd.f32 0.0, %v481
        %v483 = vpop.f32.mrb[0].mxu0
        %484 = vmatprep.mubr.f32.mxu0 0.0
        %485 = vmatmul.mubr.f32.gmra.mrb[0].mxu0 %v349
        %v486 = vpop.f32.mrb[0].mxu0
        %v487 = vadd.f32 0.0, %v486
        %v488 = vpop.f32.mrb[0].mxu0
        %489 = vmatprep.mubr.f32.mxu0 0.0
        %490 = vmatmul.mubr.f32.gmra.mrb[0].mxu0 %v352
        %v491 = vpop.f32.mrb[0].mxu0
        %v492 = vadd.f32 0.0, %v491
        %v493 = vpop.f32.mrb[0].mxu0
        %494 = vmatprep.mubr.f32.mxu0 0.0
        %495 = vmatmul.mubr.f32.gmra.mrb[0].mxu0 %v355
        %v496 = vpop.f32.mrb[0].mxu0
        %v497 = vadd.f32 0.0, %v496
        %v498 = vpop.f32.mrb[0].mxu0
        %499 = vmatprep.mubr.f32.mxu0 0.0
        %500 = vmatmul.mubr.f32.gmra.mrb[0].mxu0 %v358
        %v501 = vpop.f32.mrb[0].mxu0
        %v502 = vadd.f32 0.0, %v501
        %v503 = vpop.f32.mrb[0].mxu0
        %504 = vdwg.mxu0
        %vm505 = vcmask 130048
        %v507 = vsel %vm505, %v292, 0
        %v510 = vsel %vm505, %v293, 0
        %v513 = vsel %vm505, %v294, 0
        %v516 = vsel %vm505, %v295, 0
        %v519 = vsel %vm505, %v296, 0
        %v522 = vsel %vm505, %v297, 0
        %v525 = vsel %vm505, %v298, 0
        %v528 = vsel %vm505, %v299, 0
        %v531 = vsel %vm505, %v300, 0
        %v534 = vsel %vm505, %v301, 0
        %v537 = vsel %vm505, %v302, 0
        %v540 = vsel %vm505, %v303, 0
        %v543 = vsel %vm505, %v304, 0
        %v546 = vsel %vm505, %v305, 0
        %v549 = vsel %vm505, %v306, 0
        %v552 = vsel %vm505, %v307, 0
        %554 = vmatprep.subr.mxu0 0.0
        %555 = vmatpush1.msra.mxu0 %v308
        %556 = vmatprep.subr.mxu0 0.0
        %557 = vmatpush1.msra.mxu0 %v309
        %558 = vmatprep.subr.mxu0 0.0
        %559 = vmatpush1.msra.mxu0 0.0
        %560 = vmatprep.subr.mxu0 0.0
        %561 = vmatpush1.msra.mxu0 0.0
        %562 = vmatprep.subr.mxu0 0.0
        %563 = vmatpush1.msra.mxu0 0.0
        %564 = vmatprep.subr.mxu0 0.0
        %565 = vmatpush1.msra.mxu0 0.0
        %566 = vmatprep.subr.mxu0 0.0
        %567 = vmatpush1.msra.mxu0 0.0
        %568 = vmatprep.subr.mxu0 0.0
        %569 = vmatpush1.msra.mxu0 0.0
        %570 = vmatprep.subr.mxu0 0.0
        %571 = vmatpush1.msra.mxu0 0.0
        %572 = vmatprep.subr.mxu0 0.0
        %573 = vmatpush1.msra.mxu0 0.0
        %574 = vmatprep.subr.mxu0 0.0
        %575 = vmatpush1.msra.mxu0 0.0
        %576 = vmatprep.subr.mxu0 0.0
        %577 = vmatpush1.msra.mxu0 0.0
        %578 = vmatprep.subr.mxu0 0.0
        %579 = vmatpush1.msra.mxu0 0.0
        %580 = vmatprep.subr.mxu0 0.0
        %581 = vmatpush1.msra.mxu0 0.0
        %582 = vmatprep.subr.mxu0 0.0
        %583 = vmatpush1.msra.mxu0 0.0
        %584 = vmatprep.subr.mxu0 0.0
        %585 = vmatpush1.msra.mxu0 0.0
        %586 = vmatprep.subr.mxu0 0.0
        %587 = vmatpush1.msra.mxu0 0.0
        %588 = vmatprep.subr.mxu0 0.0
        %589 = vmatpush1.msra.mxu0 0.0
        %590 = vmatprep.subr.mxu0 0.0
        %591 = vmatpush1.msra.mxu0 0.0
        %592 = vmatprep.subr.mxu0 0.0
        %593 = vmatpush1.msra.mxu0 0.0
        %594 = vmatprep.subr.mxu0 0.0
        %595 = vmatpush1.msra.mxu0 0.0
        %596 = vmatprep.subr.mxu0 0.0
        %597 = vmatpush1.msra.mxu0 0.0
        %598 = vmatprep.subr.mxu0 0.0
        %599 = vmatpush1.msra.mxu0 0.0
        %600 = vmatprep.subr.mxu0 0.0
        %601 = vmatpush1.msra.mxu0 0.0
        %602 = vmatprep.subr.mxu0 0.0
        %603 = vmatpush1.msra.mxu0 0.0
        %604 = vmatprep.subr.mxu0 0.0
        %605 = vmatpush1.msra.mxu0 0.0
        %606 = vmatprep.subr.mxu0 0.0
        %607 = vmatpush1.msra.mxu0 0.0
        %608 = vmatprep.subr.mxu0 0.0
        %609 = vmatpush1.msra.mxu0 0.0
        %610 = vmatprep.subr.mxu0 0.0
        %611 = vmatpush1.msra.mxu0 0.0
        %612 = vmatprep.subr.mxu0 0.0
        %613 = vmatpush1.msra.mxu0 0.0
        %614 = vmatprep.subr.mxu0 0.0
        %615 = vmatpush1.msra.mxu0 0.0
        %616 = vmatprep.subr.mxu0 0.0
        %617 = vmatpush1.msra.mxu0 0.0
        %618 = vmatprep.mubr.f32.mxu0 0.0
        %619 = vmatmul.mubr.f32.gmra.mrb[0].mxu0 %v507
        %v620 = vpop.f32.mrb[0].mxu0
        %v621 = vadd.f32 %v427, %v620
        %v622 = vpop.f32.mrb[0].mxu0
        %623 = vmatprep.mubr.f32.mxu0 0.0
        %624 = vmatmul.mubr.f32.gmra.mrb[0].mxu0 %v510
        %v625 = vpop.f32.mrb[0].mxu0
        %v626 = vadd.f32 %v432, %v625
        %v627 = vpop.f32.mrb[0].mxu0
        %628 = vmatprep.mubr.f32.mxu0 0.0
        %629 = vmatmul.mubr.f32.gmra.mrb[0].mxu0 %v513
        %v630 = vpop.f32.mrb[0].mxu0
        %v631 = vadd.f32 %v437, %v630
        %v632 = vpop.f32.mrb[0].mxu0
        %633 = vmatprep.mubr.f32.mxu0 0.0
        %634 = vmatmul.mubr.f32.gmra.mrb[0].mxu0 %v516
        %v635 = vpop.f32.mrb[0].mxu0
        %v636 = vadd.f32 %v442, %v635
        %v637 = vpop.f32.mrb[0].mxu0
        %638 = vmatprep.mubr.f32.mxu0 0.0
        %639 = vmatmul.mubr.f32.gmra.mrb[0].mxu0 %v519
        %v640 = vpop.f32.mrb[0].mxu0
        %v641 = vadd.f32 %v447, %v640
        %v642 = vpop.f32.mrb[0].mxu0
        %643 = vmatprep.mubr.f32.mxu0 0.0
        %644 = vmatmul.mubr.f32.gmra.mrb[0].mxu0 %v522
        %v645 = vpop.f32.mrb[0].mxu0
        %v646 = vadd.f32 %v452, %v645
        %v647 = vpop.f32.mrb[0].mxu0
        %648 = vmatprep.mubr.f32.mxu0 0.0
        %649 = vmatmul.mubr.f32.gmra.mrb[0].mxu0 %v525
        %v650 = vpop.f32.mrb[0].mxu0
        %v651 = vadd.f32 %v457, %v650
        %v652 = vpop.f32.mrb[0].mxu0
        %653 = vmatprep.mubr.f32.mxu0 0.0
        %654 = vmatmul.mubr.f32.gmra.mrb[0].mxu0 %v528
        %v655 = vpop.f32.mrb[0].mxu0
        %v656 = vadd.f32 %v462, %v655
        %v657 = vpop.f32.mrb[0].mxu0
        %658 = vmatprep.mubr.f32.mxu0 0.0
        %659 = vmatmul.mubr.f32.gmra.mrb[0].mxu0 %v531
        %v660 = vpop.f32.mrb[0].mxu0
        %v661 = vadd.f32 %v467, %v660
        %v662 = vpop.f32.mrb[0].mxu0
        %663 = vmatprep.mubr.f32.mxu0 0.0
        %664 = vmatmul.mubr.f32.gmra.mrb[0].mxu0 %v534
        %v665 = vpop.f32.mrb[0].mxu0
        %v666 = vadd.f32 %v472, %v665
        %v667 = vpop.f32.mrb[0].mxu0
        %668 = vmatprep.mubr.f32.mxu0 0.0
        %669 = vmatmul.mubr.f32.gmra.mrb[0].mxu0 %v537
        %v670 = vpop.f32.mrb[0].mxu0
        %v671 = vadd.f32 %v477, %v670
        %v672 = vpop.f32.mrb[0].mxu0
        %673 = vmatprep.mubr.f32.mxu0 0.0
        %674 = vmatmul.mubr.f32.gmra.mrb[0].mxu0 %v540
        %v675 = vpop.f32.mrb[0].mxu0
        %v676 = vadd.f32 %v482, %v675
        %v677 = vpop.f32.mrb[0].mxu0
        %678 = vmatprep.mubr.f32.mxu0 0.0
        %679 = vmatmul.mubr.f32.gmra.mrb[0].mxu0 %v543
        %v680 = vpop.f32.mrb[0].mxu0
        %v681 = vadd.f32 %v487, %v680
        %v682 = vpop.f32.mrb[0].mxu0
        %683 = vmatprep.mubr.f32.mxu0 0.0
        %684 = vmatmul.mubr.f32.gmra.mrb[0].mxu0 %v546
        %v685 = vpop.f32.mrb[0].mxu0
        %v686 = vadd.f32 %v492, %v685
        %v687 = vpop.f32.mrb[0].mxu0
        %688 = vmatprep.mubr.f32.mxu0 0.0
        %689 = vmatmul.mubr.f32.gmra.mrb[0].mxu0 %v549
        %v690 = vpop.f32.mrb[0].mxu0
        %v691 = vadd.f32 %v497, %v690
        %v692 = vpop.f32.mrb[0].mxu0
        %693 = vmatprep.mubr.f32.mxu0 0.0
        %694 = vmatmul.mubr.f32.gmra.mrb[0].mxu0 %v552
        %v695 = vpop.f32.mrb[0].mxu0
        %v696 = vadd.f32 %v502, %v695
        %v697 = vpop.f32.mrb[0].mxu0
        %698 = vdwg.mxu0
        %v699 = vlaneseq
        %v700 = vshrl.u32 %v699, 7
        %v701 = vsub.s32 0, %v700
        %v702 = vrot.slane %v291, %v701
        %v703 = vadd.f32 %v621, %v702
        %v704 = vadd.f32 %v626, %v702
        %v705 = vadd.f32 %v631, %v702
        %v706 = vadd.f32 %v636, %v702
        %v707 = vadd.f32 %v641, %v702
        %v708 = vadd.f32 %v646, %v702
        %v709 = vadd.f32 %v651, %v702
        %v710 = vadd.f32 %v656, %v702
        %v711 = vadd.f32 %v661, %v702
        %v712 = vadd.f32 %v666, %v702
        %v713 = vadd.f32 %v671, %v702
        %v714 = vadd.f32 %v676, %v702
        %v715 = vadd.f32 %v681, %v702
        %v716 = vadd.f32 %v686, %v702
        %v717 = vadd.f32 %v691, %v702
        %v718 = vadd.f32 %v696, %v702
        %v719 = vmax.f32 %v703, 0.0
        %v720 = vmax.f32 %v704, 0.0
        %v721 = vmax.f32 %v705, 0.0
        %v722 = vmax.f32 %v706, 0.0
        %v723 = vmax.f32 %v707, 0.0
        %v724 = vmax.f32 %v708, 0.0
        %v725 = vmax.f32 %v709, 0.0
        %v726 = vmax.f32 %v710, 0.0
        %v727 = vmax.f32 %v711, 0.0
        %v728 = vmax.f32 %v712, 0.0
        %v729 = vmax.f32 %v713, 0.0
        %v730 = vmax.f32 %v714, 0.0
        %v731 = vmax.f32 %v715, 0.0
        %v732 = vmax.f32 %v716, 0.0
        %v733 = vmax.f32 %v717, 0.0
        %v734 = vmax.f32 %v718, 0.0
        %v735 = vlaneseq
        %v736 = vshrl.u32 %v735, 7
        %v737 = vsub.s32 1, %v736
        %v738 = vrot.slane %v291, %v737
        %v739 = vmul.f32 %v719, %v738
        %v740 = vmul.f32 %v720, %v738
        %v741 = vmul.f32 %v721, %v738
        %v742 = vmul.f32 %v722, %v738
        %v743 = vmul.f32 %v723, %v738
        %v744 = vmul.f32 %v724, %v738
        %v745 = vmul.f32 %v725, %v738
        %v746 = vmul.f32 %v726, %v738
        %v747 = vmul.f32 %v727, %v738
        %v748 = vmul.f32 %v728, %v738
        %v749 = vmul.f32 %v729, %v738
        %v750 = vmul.f32 %v730, %v738
        %v751 = vmul.f32 %v731, %v738
        %v752 = vmul.f32 %v732, %v738
        %v753 = vmul.f32 %v733, %v738
        %v754 = vmul.f32 %v734, %v738
        %vm755 = vcmask 261120
        %v756 = vsel %vm755, %v739, 0.0
        %757 = vadd.xlane.f32.xlu0 %v756
        %v758 = vpop.xlane.xlu0 %757
        %v759 = vsel %vm755, %v740, 0.0
        %760 = vadd.xlane.f32.xlu0 %v759
        %v761 = vpop.xlane.xlu0 %760
        %v762 = vsel %vm755, %v741, 0.0
        %763 = vadd.xlane.f32.xlu0 %v762
        %v764 = vpop.xlane.xlu0 %763
        %v765 = vsel %vm755, %v742, 0.0
        %766 = vadd.xlane.f32.xlu0 %v765
        %v767 = vpop.xlane.xlu0 %766
        %v768 = vsel %vm755, %v743, 0.0
        %769 = vadd.xlane.f32.xlu0 %v768
        %v770 = vpop.xlane.xlu0 %769
        %v771 = vsel %vm755, %v744, 0.0
        %772 = vadd.xlane.f32.xlu0 %v771
        %v773 = vpop.xlane.xlu0 %772
        %v774 = vsel %vm755, %v745, 0.0
        %775 = vadd.xlane.f32.xlu0 %v774
        %v776 = vpop.xlane.xlu0 %775
        %v777 = vsel %vm755, %v746, 0.0
        %778 = vadd.xlane.f32.xlu0 %v777
        %v779 = vpop.xlane.xlu0 %778
        %v780 = vsel %vm755, %v747, 0.0
        %781 = vadd.xlane.f32.xlu0 %v780
        %v782 = vpop.xlane.xlu0 %781
        %v783 = vsel %vm755, %v748, 0.0
        %784 = vadd.xlane.f32.xlu0 %v783
        %v785 = vpop.xlane.xlu0 %784
        %v786 = vsel %vm755, %v749, 0.0
        %787 = vadd.xlane.f32.xlu0 %v786
        %v788 = vpop.xlane.xlu0 %787
        %v789 = vsel %vm755, %v750, 0.0
        %790 = vadd.xlane.f32.xlu0 %v789
        %v791 = vpop.xlane.xlu0 %790
        %v792 = vsel %vm755, %v751, 0.0
        %793 = vadd.xlane.f32.xlu0 %v792
        %v794 = vpop.xlane.xlu0 %793
        %v795 = vsel %vm755, %v752, 0.0
        %796 = vadd.xlane.f32.xlu0 %v795
        %v797 = vpop.xlane.xlu0 %796
        %v798 = vsel %vm755, %v753, 0.0
        %799 = vadd.xlane.f32.xlu0 %v798
        %v800 = vpop.xlane.xlu0 %799
        %v801 = vsel %vm755, %v754, 0.0
        %802 = vadd.xlane.f32.xlu0 %v801
        %v803 = vpop.xlane.xlu0 %802
        %v804 = vlaneseq
        %v805 = vshrl.u32 %v804, 7
        %v806 = vsub.s32 3, %v805
        %v807 = vrot.slane %v291, %v806
        %v808 = vadd.f32 %v758, %v807
        %v809 = vadd.f32 %v761, %v807
        %v810 = vadd.f32 %v764, %v807
        %v811 = vadd.f32 %v767, %v807
        %v812 = vadd.f32 %v770, %v807
        %v813 = vadd.f32 %v773, %v807
        %v814 = vadd.f32 %v776, %v807
        %v815 = vadd.f32 %v779, %v807
        %v816 = vadd.f32 %v782, %v807
        %v817 = vadd.f32 %v785, %v807
        %v818 = vadd.f32 %v788, %v807
        %v819 = vadd.f32 %v791, %v807
        %v820 = vadd.f32 %v794, %v807
        %v821 = vadd.f32 %v797, %v807
        %v822 = vadd.f32 %v800, %v807
        %v823 = vadd.f32 %v803, %v807
        %v824 = vxor.u32 %v808, 2147483648
        %v825 = vxor.u32 %v809, 2147483648
        %v826 = vxor.u32 %v810, 2147483648
        %v827 = vxor.u32 %v811, 2147483648
        %v828 = vxor.u32 %v812, 2147483648
        %v829 = vxor.u32 %v813, 2147483648
        %v830 = vxor.u32 %v814, 2147483648
        %v831 = vxor.u32 %v815, 2147483648
        %v832 = vxor.u32 %v816, 2147483648
        %v833 = vxor.u32 %v817, 2147483648
        %v834 = vxor.u32 %v818, 2147483648
        %v835 = vxor.u32 %v819, 2147483648
        %v836 = vxor.u32 %v820, 2147483648
        %v837 = vxor.u32 %v821, 2147483648
        %v838 = vxor.u32 %v822, 2147483648
        %v839 = vxor.u32 %v823, 2147483648
        %v840 = vmul.f32 %v824, 1.442695
        %v841 = vpow.pop %v840
        %v842 = vmul.f32 %v825, 1.442695
        %v843 = vpow.pop %v842
        %v844 = vmul.f32 %v826, 1.442695
        %v845 = vpow.pop %v844
        %v846 = vmul.f32 %v827, 1.442695
        %v847 = vpow.pop %v846
        %v848 = vmul.f32 %v828, 1.442695
        %v849 = vpow.pop %v848
        %v850 = vmul.f32 %v829, 1.442695
        %v851 = vpow.pop %v850
        %v852 = vmul.f32 %v830, 1.442695
        %v853 = vpow.pop %v852
        %v854 = vmul.f32 %v831, 1.442695
        %v855 = vpow.pop %v854
        %v856 = vmul.f32 %v832, 1.442695
        %v857 = vpow.pop %v856
        %v858 = vmul.f32 %v833, 1.442695
        %v859 = vpow.pop %v858
        %v860 = vmul.f32 %v834, 1.442695
        %v861 = vpow.pop %v860
        %v862 = vmul.f32 %v835, 1.442695
        %v863 = vpow.pop %v862
        %v864 = vmul.f32 %v836, 1.442695
        %v865 = vpow.pop %v864
        %v866 = vmul.f32 %v837, 1.442695
        %v867 = vpow.pop %v866
        %v868 = vmul.f32 %v838, 1.442695
        %v869 = vpow.pop %v868
        %v870 = vmul.f32 %v839, 1.442695
        %v871 = vpow.pop %v870
        %v872 = vadd.f32 %v841, 1.0
        %v873 = vadd.f32 %v843, 1.0
        %v874 = vadd.f32 %v845, 1.0
        %v875 = vadd.f32 %v847, 1.0
        %v876 = vadd.f32 %v849, 1.0
        %v877 = vadd.f32 %v851, 1.0
        %v878 = vadd.f32 %v853, 1.0
        %v879 = vadd.f32 %v855, 1.0
        %v880 = vadd.f32 %v857, 1.0
        %v881 = vadd.f32 %v859, 1.0
        %v882 = vadd.f32 %v861, 1.0
        %v883 = vadd.f32 %v863, 1.0
        %v884 = vadd.f32 %v865, 1.0
        %v885 = vadd.f32 %v867, 1.0
        %v886 = vadd.f32 %v869, 1.0
        %v887 = vadd.f32 %v871, 1.0
        %v888 = vrcp.pop %v872
        %v889 = vmul.f32 1.0, %v888
        %v890 = vrcp.pop %v873
        %v891 = vmul.f32 1.0, %v890
        %v892 = vrcp.pop %v874
        %v893 = vmul.f32 1.0, %v892
        %v894 = vrcp.pop %v875
        %v895 = vmul.f32 1.0, %v894
        %v896 = vrcp.pop %v876
        %v897 = vmul.f32 1.0, %v896
        %v898 = vrcp.pop %v877
        %v899 = vmul.f32 1.0, %v898
        %v900 = vrcp.pop %v878
        %v901 = vmul.f32 1.0, %v900
        %v902 = vrcp.pop %v879
        %v903 = vmul.f32 1.0, %v902
        %v904 = vrcp.pop %v880
        %v905 = vmul.f32 1.0, %v904
        %v906 = vrcp.pop %v881
        %v907 = vmul.f32 1.0, %v906
        %v908 = vrcp.pop %v882
        %v909 = vmul.f32 1.0, %v908
        %v910 = vrcp.pop %v883
        %v911 = vmul.f32 1.0, %v910
        %v912 = vrcp.pop %v884
        %v913 = vmul.f32 1.0, %v912
        %v914 = vrcp.pop %v885
        %v915 = vmul.f32 1.0, %v914
        %v916 = vrcp.pop %v886
        %v917 = vmul.f32 1.0, %v916
        %v918 = vrcp.pop %v887
        %v919 = vmul.f32 1.0, %v918
        %v920 = vld [vmem:[%s4] sm:$0xff]
        %v921 = vld [vmem:[%s4 + $0x8] sm:$0xff]
        %v922 = vld [vmem:[%s4 + $0x10] sm:$0xff]
        %v923 = vld [vmem:[%s4 + $0x18] sm:$0xff]
        %v924 = vsel %vm755, %v275, 0
        %v926 = vsel %vm755, %v276, 0
        %v928 = vsel %vm755, %v277, 0
        %v930 = vsel %vm755, %v278, 0
        %v932 = vsel %vm755, %v279, 0
        %v934 = vsel %vm755, %v280, 0
        %v936 = vsel %vm755, %v281, 0
        %v938 = vsel %vm755, %v282, 0
        %v940 = vsel %vm755, %v283, 0
        %v942 = vsel %vm755, %v284, 0
        %v944 = vsel %vm755, %v285, 0
        %v946 = vsel %vm755, %v286, 0
        %v948 = vsel %vm755, %v287, 0
        %v950 = vsel %vm755, %v288, 0
        %v952 = vsel %vm755, %v289, 0
        %v954 = vsel %vm755, %v290, 0
        %956 = vmatprep.subr.mxu0 0.0
        %957 = vmatpush1.msra.mxu0 %v920
        %958 = vmatprep.subr.mxu0 0.0
        %959 = vmatpush1.msra.mxu0 %v921
        %960 = vmatprep.subr.mxu0 0.0
        %961 = vmatpush1.msra.mxu0 %v922
        %962 = vmatprep.subr.mxu0 0.0
        %963 = vmatpush1.msra.mxu0 %v923
        %964 = vmatprep.subr.mxu0 0.0
        %965 = vmatpush1.msra.mxu0 0.0
        %966 = vmatprep.subr.mxu0 0.0
        %967 = vmatpush1.msra.mxu0 0.0
        %968 = vmatprep.subr.mxu0 0.0
        %969 = vmatpush1.msra.mxu0 0.0
        %970 = vmatprep.subr.mxu0 0.0
        %971 = vmatpush1.msra.mxu0 0.0
        %972 = vmatprep.subr.mxu0 0.0
        %973 = vmatpush1.msra.mxu0 0.0
        %974 = vmatprep.subr.mxu0 0.0
        %975 = vmatpush1.msra.mxu0 0.0
        %976 = vmatprep.subr.mxu0 0.0
        %977 = vmatpush1.msra.mxu0 0.0
        %978 = vmatprep.subr.mxu0 0.0
        %979 = vmatpush1.msra.mxu0 0.0
        %980 = vmatprep.subr.mxu0 0.0
        %981 = vmatpush1.msra.mxu0 0.0
        %982 = vmatprep.subr.mxu0 0.0
        %983 = vmatpush1.msra.mxu0 0.0
        %984 = vmatprep.subr.mxu0 0.0
        %985 = vmatpush1.msra.mxu0 0.0
        %986 = vmatprep.subr.mxu0 0.0
        %987 = vmatpush1.msra.mxu0 0.0
        %988 = vmatprep.subr.mxu0 0.0
        %989 = vmatpush1.msra.mxu0 0.0
        %990 = vmatprep.subr.mxu0 0.0
        %991 = vmatpush1.msra.mxu0 0.0
        %992 = vmatprep.subr.mxu0 0.0
        %993 = vmatpush1.msra.mxu0 0.0
        %994 = vmatprep.subr.mxu0 0.0
        %995 = vmatpush1.msra.mxu0 0.0
        %996 = vmatprep.subr.mxu0 0.0
        %997 = vmatpush1.msra.mxu0 0.0
        %998 = vmatprep.subr.mxu0 0.0
        %999 = vmatpush1.msra.mxu0 0.0
        %1000 = vmatprep.subr.mxu0 0.0
        %1001 = vmatpush1.msra.mxu0 0.0
        %1002 = vmatprep.subr.mxu0 0.0
        %1003 = vmatpush1.msra.mxu0 0.0
        %1004 = vmatprep.subr.mxu0 0.0
        %1005 = vmatpush1.msra.mxu0 0.0
        %1006 = vmatprep.subr.mxu0 0.0
        %1007 = vmatpush1.msra.mxu0 0.0
        %1008 = vmatprep.subr.mxu0 0.0
        %1009 = vmatpush1.msra.mxu0 0.0
        %1010 = vmatprep.subr.mxu0 0.0
        %1011 = vmatpush1.msra.mxu0 0.0
        %1012 = vmatprep.subr.mxu0 0.0
        %1013 = vmatpush1.msra.mxu0 0.0
        %1014 = vmatprep.subr.mxu0 0.0
        %1015 = vmatpush1.msra.mxu0 0.0
        %1016 = vmatprep.subr.mxu0 0.0
        %1017 = vmatpush1.msra.mxu0 0.0
        %1018 = vmatprep.subr.mxu0 0.0
        %1019 = vmatpush1.msra.mxu0 0.0
        %1020 = vmatprep.mubr.f32.mxu0 0.0
        %1021 = vmatmul.mubr.f32.gmra.mrb[0].mxu0 %v924
        %v1022 = vpop.f32.mrb[0].mxu0
        %v1023 = vadd.f32 0.0, %v1022
        %v1024 = vpop.f32.mrb[0].mxu0
        %1025 = vmatprep.mubr.f32.mxu0 0.0
        %1026 = vmatmul.mubr.f32.gmra.mrb[0].mxu0 %v926
        %v1027 = vpop.f32.mrb[0].mxu0
        %v1028 = vadd.f32 0.0, %v1027
        %v1029 = vpop.f32.mrb[0].mxu0
        %1030 = vmatprep.mubr.f32.mxu0 0.0
        %1031 = vmatmul.mubr.f32.gmra.mrb[0].mxu0 %v928
        %v1032 = vpop.f32.mrb[0].mxu0
        %v1033 = vadd.f32 0.0, %v1032
        %v1034 = vpop.f32.mrb[0].mxu0
        %1035 = vmatprep.mubr.f32.mxu0 0.0
        %1036 = vmatmul.mubr.f32.gmra.mrb[0].mxu0 %v930
        %v1037 = vpop.f32.mrb[0].mxu0
        %v1038 = vadd.f32 0.0, %v1037
        %v1039 = vpop.f32.mrb[0].mxu0
        %1040 = vmatprep.mubr.f32.mxu0 0.0
        %1041 = vmatmul.mubr.f32.gmra.mrb[0].mxu0 %v932
        %v1042 = vpop.f32.mrb[0].mxu0
        %v1043 = vadd.f32 0.0, %v1042
        %v1044 = vpop.f32.mrb[0].mxu0
        %1045 = vmatprep.mubr.f32.mxu0 0.0
        %1046 = vmatmul.mubr.f32.gmra.mrb[0].mxu0 %v934
        %v1047 = vpop.f32.mrb[0].mxu0
        %v1048 = vadd.f32 0.0, %v1047
        %v1049 = vpop.f32.mrb[0].mxu0
        %1050 = vmatprep.mubr.f32.mxu0 0.0
        %1051 = vmatmul.mubr.f32.gmra.mrb[0].mxu0 %v936
        %v1052 = vpop.f32.mrb[0].mxu0
        %v1053 = vadd.f32 0.0, %v1052
        %v1054 = vpop.f32.mrb[0].mxu0
        %1055 = vmatprep.mubr.f32.mxu0 0.0
        %1056 = vmatmul.mubr.f32.gmra.mrb[0].mxu0 %v938
        %v1057 = vpop.f32.mrb[0].mxu0
        %v1058 = vadd.f32 0.0, %v1057
        %v1059 = vpop.f32.mrb[0].mxu0
        %1060 = vmatprep.mubr.f32.mxu0 0.0
        %1061 = vmatmul.mubr.f32.gmra.mrb[0].mxu0 %v940
        %v1062 = vpop.f32.mrb[0].mxu0
        %v1063 = vadd.f32 0.0, %v1062
        %v1064 = vpop.f32.mrb[0].mxu0
        %1065 = vmatprep.mubr.f32.mxu0 0.0
        %1066 = vmatmul.mubr.f32.gmra.mrb[0].mxu0 %v942
        %v1067 = vpop.f32.mrb[0].mxu0
        %v1068 = vadd.f32 0.0, %v1067
        %v1069 = vpop.f32.mrb[0].mxu0
        %1070 = vmatprep.mubr.f32.mxu0 0.0
        %1071 = vmatmul.mubr.f32.gmra.mrb[0].mxu0 %v944
        %v1072 = vpop.f32.mrb[0].mxu0
        %v1073 = vadd.f32 0.0, %v1072
        %v1074 = vpop.f32.mrb[0].mxu0
        %1075 = vmatprep.mubr.f32.mxu0 0.0
        %1076 = vmatmul.mubr.f32.gmra.mrb[0].mxu0 %v946
        %v1077 = vpop.f32.mrb[0].mxu0
        %v1078 = vadd.f32 0.0, %v1077
        %v1079 = vpop.f32.mrb[0].mxu0
        %1080 = vmatprep.mubr.f32.mxu0 0.0
        %1081 = vmatmul.mubr.f32.gmra.mrb[0].mxu0 %v948
        %v1082 = vpop.f32.mrb[0].mxu0
        %v1083 = vadd.f32 0.0, %v1082
        %v1084 = vpop.f32.mrb[0].mxu0
        %1085 = vmatprep.mubr.f32.mxu0 0.0
        %1086 = vmatmul.mubr.f32.gmra.mrb[0].mxu0 %v950
        %v1087 = vpop.f32.mrb[0].mxu0
        %v1088 = vadd.f32 0.0, %v1087
        %v1089 = vpop.f32.mrb[0].mxu0
        %1090 = vmatprep.mubr.f32.mxu0 0.0
        %1091 = vmatmul.mubr.f32.gmra.mrb[0].mxu0 %v952
        %v1092 = vpop.f32.mrb[0].mxu0
        %v1093 = vadd.f32 0.0, %v1092
        %v1094 = vpop.f32.mrb[0].mxu0
        %1095 = vmatprep.mubr.f32.mxu0 0.0
        %1096 = vmatmul.mubr.f32.gmra.mrb[0].mxu0 %v954
        %v1097 = vpop.f32.mrb[0].mxu0
        %v1098 = vadd.f32 0.0, %v1097
        %v1099 = vpop.f32.mrb[0].mxu0
        %1100 = vdwg.mxu0
        %1102 = vset.pattern.permute.xlu0 0
        %1103 = vperm.xlu0 %1102, %v889
        %v1104 = vpop.permute.xlu0 %1103
        %1107 = vset.pattern.permute.xlu0 0
        %1108 = vperm.xlu0 %1107, %v891
        %v1109 = vpop.permute.xlu0 %1108
        %1112 = vset.pattern.permute.xlu0 0
        %1113 = vperm.xlu0 %1112, %v893
        %v1114 = vpop.permute.xlu0 %1113
        %1117 = vset.pattern.permute.xlu0 0
        %1118 = vperm.xlu0 %1117, %v895
        %v1119 = vpop.permute.xlu0 %1118
        %1122 = vset.pattern.permute.xlu0 0
        %1123 = vperm.xlu0 %1122, %v897
        %v1124 = vpop.permute.xlu0 %1123
        %1127 = vset.pattern.permute.xlu0 0
        %1128 = vperm.xlu0 %1127, %v899
        %v1129 = vpop.permute.xlu0 %1128
        %1132 = vset.pattern.permute.xlu0 0
        %1133 = vperm.xlu0 %1132, %v901
        %v1134 = vpop.permute.xlu0 %1133
        %1137 = vset.pattern.permute.xlu0 0
        %1138 = vperm.xlu0 %1137, %v903
        %v1139 = vpop.permute.xlu0 %1138
        %1142 = vset.pattern.permute.xlu0 0
        %1143 = vperm.xlu0 %1142, %v905
        %v1144 = vpop.permute.xlu0 %1143
        %1147 = vset.pattern.permute.xlu0 0
        %1148 = vperm.xlu0 %1147, %v907
        %v1149 = vpop.permute.xlu0 %1148
        %1152 = vset.pattern.permute.xlu0 0
        %1153 = vperm.xlu0 %1152, %v909
        %v1154 = vpop.permute.xlu0 %1153
        %1157 = vset.pattern.permute.xlu0 0
        %1158 = vperm.xlu0 %1157, %v911
        %v1159 = vpop.permute.xlu0 %1158
        %1162 = vset.pattern.permute.xlu0 0
        %1163 = vperm.xlu0 %1162, %v913
        %v1164 = vpop.permute.xlu0 %1163
        %1167 = vset.pattern.permute.xlu0 0
        %1168 = vperm.xlu0 %1167, %v915
        %v1169 = vpop.permute.xlu0 %1168
        %1172 = vset.pattern.permute.xlu0 0
        %1173 = vperm.xlu0 %1172, %v917
        %v1174 = vpop.permute.xlu0 %1173
        %1177 = vset.pattern.permute.xlu0 0
        %1178 = vperm.xlu0 %1177, %v919
        %v1179 = vpop.permute.xlu0 %1178
        %v1181 = vmul.f32 %v1023, %v1104
        %v1182 = vmul.f32 %v1028, %v1109
        %v1183 = vmul.f32 %v1033, %v1114
        %v1184 = vmul.f32 %v1038, %v1119
        %v1185 = vmul.f32 %v1043, %v1124
        %v1186 = vmul.f32 %v1048, %v1129
        %v1187 = vmul.f32 %v1053, %v1134
        %v1188 = vmul.f32 %v1058, %v1139
        %v1189 = vmul.f32 %v1063, %v1144
        %v1190 = vmul.f32 %v1068, %v1149
        %v1191 = vmul.f32 %v1073, %v1154
        %v1192 = vmul.f32 %v1078, %v1159
        %v1193 = vmul.f32 %v1083, %v1164
        %v1194 = vmul.f32 %v1088, %v1169
        %v1195 = vmul.f32 %v1093, %v1174
        %v1196 = vmul.f32 %v1098, %v1179
        %v1197 = vlaneseq
        %v1198 = vshrl.u32 %v1197, 7
        %v1199 = vsub.s32 2, %v1198
        %v1200 = vrot.slane %v291, %v1199
        %v1201 = vadd.f32 %v1181, %v1200
        %v1202 = vadd.f32 %v1182, %v1200
        %v1203 = vadd.f32 %v1183, %v1200
        %v1204 = vadd.f32 %v1184, %v1200
        %v1205 = vadd.f32 %v1185, %v1200
        %v1206 = vadd.f32 %v1186, %v1200
        %v1207 = vadd.f32 %v1187, %v1200
        %v1208 = vadd.f32 %v1188, %v1200
        %v1209 = vadd.f32 %v1189, %v1200
        %v1210 = vadd.f32 %v1190, %v1200
        %v1211 = vadd.f32 %v1191, %v1200
        %v1212 = vadd.f32 %v1192, %v1200
        %v1213 = vadd.f32 %v1193, %v1200
        %v1214 = vadd.f32 %v1194, %v1200
        %v1215 = vadd.f32 %v1195, %v1200
        %v1216 = vadd.f32 %v1196, %v1200
        %v1217 = vmax.f32 %v1201, 0.0
        %v1218 = vmax.f32 %v1202, 0.0
        %v1219 = vmax.f32 %v1203, 0.0
        %v1220 = vmax.f32 %v1204, 0.0
        %v1221 = vmax.f32 %v1205, 0.0
        %v1222 = vmax.f32 %v1206, 0.0
        %v1223 = vmax.f32 %v1207, 0.0
        %v1224 = vmax.f32 %v1208, 0.0
        %v1225 = vmax.f32 %v1209, 0.0
        %v1226 = vmax.f32 %v1210, 0.0
        %v1227 = vmax.f32 %v1211, 0.0
        %v1228 = vmax.f32 %v1212, 0.0
        %v1229 = vmax.f32 %v1213, 0.0
        %v1230 = vmax.f32 %v1214, 0.0
        %v1231 = vmax.f32 %v1215, 0.0
        %v1232 = vmax.f32 %v1216, 0.0
        %1233 = vst [vmem:[%s261] sm:$0xff] %v1217
        %1234 = vst [vmem:[%s261 + $0x8] sm:$0xff] %v1218
        %1235 = vst [vmem:[%s261 + $0x10] sm:$0xff] %v1219
        %1236 = vst [vmem:[%s261 + $0x18] sm:$0xff] %v1220
        %1237 = vst [vmem:[%s261 + $0x20] sm:$0xff] %v1221
        %1238 = vst [vmem:[%s261 + $0x28] sm:$0xff] %v1222
        %1239 = vst [vmem:[%s261 + $0x30] sm:$0xff] %v1223
        %1240 = vst [vmem:[%s261 + $0x38] sm:$0xff] %v1224
        %1241 = vst [vmem:[%s261 + $0x40] sm:$0xff] %v1225
        %1242 = vst [vmem:[%s261 + $0x48] sm:$0xff] %v1226
        %1243 = vst [vmem:[%s261 + $0x50] sm:$0xff] %v1227
        %1244 = vst [vmem:[%s261 + $0x58] sm:$0xff] %v1228
        %1245 = vst [vmem:[%s261 + $0x60] sm:$0xff] %v1229
        %1246 = vst [vmem:[%s261 + $0x68] sm:$0xff] %v1230
        %1247 = vst [vmem:[%s261 + $0x70] sm:$0xff] %v1231
        %1248 = vst [vmem:[%s261 + $0x78] sm:$0xff] %v1232
        %s1249 = sand.u32 %s164, 1
        %s1250 = scalar_lea.sflag [#allocation3], %s1249
        %s1251 = sand.u32 %s164, 1
        %s1252 = smul.addr %s1251, 128
        %s1253 = scalar_lea.vmem [#allocation2], %s1252
        // Predicated region
        $region45: #{tpu_custom_call.1} parent=43 // pred_check
          %p1254 = pneg %p174
        $region46: #{tpu_custom_call.1} parent=43 // pred_check_branch
          %1256 = sbr.rel (%p1254) target = $region48
        $region47: #{tpu_custom_call.1} parent=43 // pred_region
          %s1257 = smul.u32 16, %s20
          %s1259 = ssub.s32 2048, 2048
          %1260 = vsyncadd %s1250, %s1259
          %s1261 = smul.addr %s1257, 128
          %s1262 = scalar_lea.hbm %s6, %s1261
          %s1263 = sshll.u32 %s1253, 4
          %s1264 = int_to_ptr.vmem [resolvable:$true] %s1263
          %1269 = dma.vmem_to_hbm [thread:$0]  %s1264, 2048, %s1262, %s1250, 128, 128, 8
        $region48: #{tpu_custom_call.1} parent=43 // pred_fallthru
          _
      $region44: #{tpu_custom_call.1} parent=5 // pred_fallthru
        _
      %p1270 = scmp.le.s32.totalorder 2, %s15
      // Predicated region
      $region49: #{tpu_custom_call.1} parent=5 // pred_check
        %p1271 = pneg %p1270
      $region50: #{tpu_custom_call.1} parent=5 // pred_check_branch
        %1273 = sbr.rel (%p1271) target = $region52
      $region51: #{tpu_custom_call.1} parent=5 // pred_region
        %s1274 = ssub.s32 %s15, 2
        // Predicated region
        $region53: #{tpu_custom_call.1} parent=51 // pred_check
          %p1275 = pneg %p180
        $region54: #{tpu_custom_call.1} parent=51 // pred_check_branch
          %1277 = sbr.rel (%p1275) target = $region56
        $region55: #{tpu_custom_call.1} parent=51 // pred_region
          %s1278 = sand.u32 %s165, 1
          %s1279 = scalar_lea.sflag [#allocation3], %s1278
          %s1280 = sand.u32 %s165, 1
          %s1281 = smul.addr %s1280, 128
          %s1282 = scalar_lea.vmem [#allocation2], %s1281
          %1283 = dma.done %s1279, 2048
        $region56: #{tpu_custom_call.1} parent=51 // pred_fallthru
          _
      $region52: #{tpu_custom_call.1} parent=5 // pred_fallthru
        _
    $region6: #{tpu_custom_call.1} parent=1 // loop_footer
      %s19 = sadd.s32 1, %s15
    $region7: #{tpu_custom_call.1} parent=1 // loop_footer_branch
      %14 = sbr.rel target = $region3
    $region8: #{tpu_custom_call.1} parent=1 // loop_exit
      _
    %1284 = vsyncpa [#allocation3], 1
    %s1285 = scalar_lea.sflag [#allocation3], 1
    %1286 = vsyncpa %s1285, 1

</llo_original>
